<compile_context>
chip_gen: v5e
topology: v5e:2x2
jax: 0.10.0
libtpu: 0.0.40
codegen_flags: <defaults>
</compile_context>

<pallas_src>
import itertools
import numpy as np

import jax
import jax.numpy as jnp
from jax.experimental import pallas as pl
from jax.experimental.pallas import tpu as pltpu

_EPS = 1e-6
_NEG = -3.0e38

DEPTHS = [3, 3, 9, 3]
DIMS = [96, 192, 384, 768]
DW_KERNEL_SIZE = 5                  # -> 125 offsets in 3D (compacted per level)
DS_KERNEL_SIZE = 2                  # -> 8 offsets in 3D

_TILE_N = 512                       # row tile for every N-tiled kernel
_KC_DW = 8                          # depthwise offsets processed per grid step
_K_DW = DW_KERNEL_SIZE ** 3         # 125
_K_DS = DS_KERNEL_SIZE ** 3         # 8


def _round_up(n, m):
    return ((n + m - 1) // m) * m


def _pick_vmem_limit():
    # 48 MiB is safe everywhere (v7x physical VMEM is 64 MiB); raise the scoped
    # limit on generations with 128 MiB physical VMEM (v4 / v5e / v6e).
    try:
        kind = jax.devices()[0].device_kind.lower()
        if ('v7' not in kind) and any(t in kind for t in ('v4', 'v5', 'v6')):
            return 96 * 1024 * 1024
    except Exception:
        pass
    return 48 * 1024 * 1024


_VMEM_LIMIT = _pick_vmem_limit()


# ----------------------------------------------------------------------------
# Pallas kernels
# ----------------------------------------------------------------------------
def _layernorm(x, g, b):
    mu = jnp.mean(x, axis=-1, keepdims=True)
    var = jnp.mean(jnp.square(x - mu), axis=-1, keepdims=True)
    return (x - mu) * jax.lax.rsqrt(var + _EPS) * g + b


def _linear_kernel(x_ref, w_ref, b_ref, o_ref):
    o_ref[...] = (jnp.dot(x_ref[...], w_ref[...],
                          preferred_element_type=jnp.float32) + b_ref[...])


def _linear_gelu_kernel(x_ref, w_ref, b_ref, o_ref):
    y = jnp.dot(x_ref[...], w_ref[...],
                preferred_element_type=jnp.float32) + b_ref[...]
    o_ref[...] = jax.nn.gelu(y, approximate=False)      # nn.GELU default (erf)


def _ln_kernel(x_ref, g_ref, b_ref, o_ref):
    x = x_ref[...].astype(jnp.float32)
    o_ref[...] = _layernorm(x, g_ref[...], b_ref[...]).astype(o_ref.dtype)


def _dwconv_ln_kernel(g_ref, w_ref, b_ref, lg_ref, lb_ref, o_ref, acc_ref):
    # grid = (N tiles, K chunks); accumulate the depthwise MAC over the compacted
    # offset set in a resident f32 accumulator, fuse LayerNorm at the last K step.
    k = pl.program_id(1)

    @pl.when(k == 0)
    def _():
        acc_ref[...] = jnp.zeros_like(acc_ref)

    wt = w_ref[...]                                      # (KC, C) f32
    total = acc_ref[...]
    for j in range(_KC_DW):                              # static unroll, VPU MACs
        total = total + g_ref[j].astype(jnp.float32) * wt[j:j + 1, :]
    acc_ref[...] = total

    @pl.when(k == pl.num_programs(1) - 1)
    def _():
        x = acc_ref[...] + b_ref[...]
        o_ref[...] = _layernorm(x, lg_ref[...], lb_ref[...]).astype(o_ref.dtype)


def _grn_pw2_kernel(h_ref, sc_ref, gb_ref, w_ref, b_ref, r_ref, o_ref):
    # GRN apply as a single bf16 FMA (scale = 1 + gamma*nx precomputed),
    # fused with the pwconv2 bf16 MXU matmul + f32 bias + residual add.
    u = h_ref[...] * sc_ref[...] + gb_ref[...]           # bf16
    o_ref[...] = (jnp.dot(u, w_ref[...], preferred_element_type=jnp.float32)
                  + b_ref[...] + r_ref[...])


def _downsample_kernel(g_ref, w_ref, b_ref, o_ref):
    # strided sparse conv with K folded into the contraction: one deep bf16 matmul.
    o_ref[...] = (jnp.dot(g_ref[...], w_ref[...],
                          preferred_element_type=jnp.float32) + b_ref[...])


# ----------------------------------------------------------------------------
# Pallas wrappers
# ----------------------------------------------------------------------------
def _cparams(sem):
    return pltpu.CompilerParams(dimension_semantics=sem,
                                vmem_limit_bytes=_VMEM_LIMIT)


def _simple_call(kernel, out_shape, *args):
    return pl.pallas_call(
        kernel,
        out_shape=out_shape,
        compiler_params=pltpu.CompilerParams(vmem_limit_bytes=_VMEM_LIMIT),
    )(*args)


def pallas_linear(x, w, b):
    # tiny (B-row) linears: global MLP + classification head
    return _simple_call(_linear_kernel,
                        jax.ShapeDtypeStruct((x.shape[0], w.shape[1]), jnp.float32),
                        x, w, b.reshape(1, -1))


def pallas_linear_gelu(x, w, b):
    return _simple_call(_linear_gelu_kernel,
                        jax.ShapeDtypeStruct((x.shape[0], w.shape[1]), jnp.float32),
                        x, w, b.reshape(1, -1))


def pallas_stem_ln(feats, w, xg, starts0, counts0, g, b):
    # 1x1 sparse conv (no bias) + per-batch broadcasted global feature + LayerNorm.
    # xg stays (B, Cout) resident in VMEM; per-batch row ranges come via scalar
    # prefetch (rows are sorted by batch), so no (N, Cout) gather is materialized.
    N, Cin = feats.shape
    Cout = w.shape[1]
    B = int(xg.shape[0])

    def kernel(st_ref, ct_ref, f_ref, w_ref, xg_ref, g_ref, b_ref, o_ref):
        i = pl.program_id(0)
        y = jnp.dot(f_ref[...], w_ref[...], preferred_element_type=jnp.float32)
        row = i * _TILE_N + jax.lax.broadcasted_iota(jnp.int32, (_TILE_N, 1), 0)
        for bb in range(B):                              # static unroll over batch
            s = st_ref[bb]
            in_b = (row >= s) & (row < s + ct_ref[bb])
            y = y + jnp.where(in_b, xg_ref[bb:bb + 1, :], 0.0)
        o_ref[...] = _layernorm(y, g_ref[...], b_ref[...])

    return pl.pallas_call(
        kernel,
        out_shape=jax.ShapeDtypeStruct((N, Cout), jnp.float32),
        grid_spec=pltpu.PrefetchScalarGridSpec(
            num_scalar_prefetch=2,
            grid=(N // _TILE_N,),
            in_specs=[pl.BlockSpec((_TILE_N, Cin), lambda i, s, c: (i, 0)),
                      pl.BlockSpec((Cin, Cout), lambda i, s, c: (0, 0)),
                      pl.BlockSpec((B, Cout), lambda i, s, c: (0, 0)),
                      pl.BlockSpec((1, Cout), lambda i, s, c: (0, 0)),
                      pl.BlockSpec((1, Cout), lambda i, s, c: (0, 0))],
            out_specs=pl.BlockSpec((_TILE_N, Cout), lambda i, s, c: (i, 0))),
        compiler_params=_cparams(("parallel",)),
    )(starts0, counts0, feats, w, xg, g.reshape(1, -1), b.reshape(1, -1))


def pallas_layernorm(x, g, b, out_dtype=jnp.float32):
    N, C = x.shape
    return pl.pallas_call(
        _ln_kernel,
        out_shape=jax.ShapeDtypeStruct((N, C), out_dtype),
        grid=(N // _TILE_N,),
        in_specs=[pl.BlockSpec((_TILE_N, C), lambda i: (i, 0)),
                  pl.BlockSpec((1, C), lambda i: (0, 0)),
                  pl.BlockSpec((1, C), lambda i: (0, 0))],
        out_specs=pl.BlockSpec((_TILE_N, C), lambda i: (i, 0)),
        compiler_params=_cparams(("parallel",)),
    )(x, g.reshape(1, -1), b.reshape(1, -1))


def pallas_dwconv_ln(gathered, w, b, ln_g, ln_b):
    # gathered: (K_pad, N_pad, C) bf16 neighbour features for the COMPACTED offset
    # set (missing neighbours = 0); w: (K_pad, C) matching weight rows.
    K_pad, N, C = gathered.shape
    return pl.pallas_call(
        _dwconv_ln_kernel,
        out_shape=jax.ShapeDtypeStruct((N, C), jnp.bfloat16),
        grid=(N // _TILE_N, K_pad // _KC_DW),
        in_specs=[pl.BlockSpec((_KC_DW, _TILE_N, C), lambda i, k: (k, i, 0)),
                  pl.BlockSpec((_KC_DW, C), lambda i, k: (k, 0)),
                  pl.BlockSpec((1, C), lambda i, k: (0, 0)),
                  pl.BlockSpec((1, C), lambda i, k: (0, 0)),
                  pl.BlockSpec((1, C), lambda i, k: (0, 0))],
        out_specs=pl.BlockSpec((_TILE_N, C), lambda i, k: (i, 0)),
        scratch_shapes=[pltpu.VMEM((_TILE_N, C), jnp.float32)],
        compiler_params=_cparams(("parallel", "arbitrary")),
    )(gathered, w, b.reshape(1, -1), ln_g.reshape(1, -1), ln_b.reshape(1, -1))


def pallas_pw1_gelu_grnsq(x, w, b, n_valid):
    # pwconv1 (bf16 MXU) + exact-erf GELU fused with the per-tile GRN
    # sum-of-squares partial reduction (so h is never re-read from HBM).
    N, Cin = x.shape
    Cout = w.shape[1]
    nT = N // _TILE_N

    def kernel(x_ref, w_ref, b_ref, h_ref, sq_ref):
        i = pl.program_id(0)
        y = jnp.dot(x_ref[...], w_ref[...],
                    preferred_element_type=jnp.float32) + b_ref[...]
        h = jax.nn.gelu(y, approximate=False)            # nn.GELU default (erf)
        h_ref[...] = h.astype(jnp.bfloat16)
        row = i * _TILE_N + jax.lax.broadcasted_iota(jnp.int32, (_TILE_N, 1), 0)
        hm = jnp.where(row < n_valid, h, 0.0)            # exclude padded rows
        sq_ref[...] = jnp.sum(hm * hm, axis=0, keepdims=True)

    return pl.pallas_call(
        kernel,
        out_shape=(jax.ShapeDtypeStruct((N, Cout), jnp.bfloat16),
                   jax.ShapeDtypeStruct((nT, Cout), jnp.float32)),
        grid=(nT,),
        in_specs=[pl.BlockSpec((_TILE_N, Cin), lambda i: (i, 0)),
                  pl.BlockSpec((Cin, Cout), lambda i: (0, 0)),
                  pl.BlockSpec((1, Cout), lambda i: (0, 0))],
        out_specs=[pl.BlockSpec((_TILE_N, Cout), lambda i: (i, 0)),
                   pl.BlockSpec((1, Cout), lambda i: (i, 0))],
        compiler_params=_cparams(("parallel",)),
    )(x, w.astype(jnp.bfloat16), b.reshape(1, -1))


def pallas_grn_scale(sq_partial, gg):
    # Finish the GRN stats (sqrt / mean) and emit scale = 1 + gamma * nx in bf16.
    nT, C4 = sq_partial.shape

    def kernel(p_ref, g_ref, o_ref):
        gx = jnp.sqrt(jnp.sum(p_ref[...], axis=0, keepdims=True))
        nx = gx / (jnp.mean(gx, axis=-1, keepdims=True) + _EPS)
        o_ref[...] = (1.0 + g_ref[...] * nx).astype(jnp.bfloat16)

    return _simple_call(kernel,
                        jax.ShapeDtypeStruct((1, C4), jnp.bfloat16),
                        sq_partial, gg.reshape(1, -1))


def pallas_grn_pw2_add(h, scale, gb, w, b, residual):
    N, Cin = h.shape
    Cout = w.shape[1]
    return pl.pallas_call(
        _grn_pw2_kernel,
        out_shape=jax.ShapeDtypeStruct((N, Cout), jnp.float32),
        grid=(N // _TILE_N,),
        in_specs=[pl.BlockSpec((_TILE_N, Cin), lambda i: (i, 0)),
                  pl.BlockSpec((1, Cin), lambda i: (0, 0)),
                  pl.BlockSpec((1, Cin), lambda i: (0, 0)),
                  pl.BlockSpec((Cin, Cout), lambda i: (0, 0)),
                  pl.BlockSpec((1, Cout), lambda i: (0, 0)),
                  pl.BlockSpec((_TILE_N, Cout), lambda i: (i, 0))],
        out_specs=pl.BlockSpec((_TILE_N, Cout), lambda i: (i, 0)),
        compiler_params=_cparams(("parallel",)),
    )(h, scale, gb.reshape(1, -1).astype(jnp.bfloat16),
      w.astype(jnp.bfloat16), b.reshape(1, -1), residual)


def pallas_downsample(x_ln, w, b, ds_idx):
    # x_ln: (N_pad, Cin) bf16, already LayerNorm'd; ds_idx: (M_pad, 8), sentinel == N_pad
    # TODO(synk): the 8-way neighbour gather is plain-XLA glue (jnp.take); a per-row
    # DMA gather inside Pallas is not worthwhile at these row/channel sizes.
    N, Cin = x_ln.shape
    M, K = ds_idx.shape
    Cout = w.shape[2]
    xe = jnp.concatenate([x_ln, jnp.zeros((1, Cin), jnp.bfloat16)], axis=0)
    gathered = jnp.take(xe, ds_idx, axis=0).reshape(M, K * Cin)
    w2d = w.reshape(K * Cin, Cout).astype(jnp.bfloat16)
    return pl.pallas_call(
        _downsample_kernel,
        out_shape=jax.ShapeDtypeStruct((M, Cout), jnp.float32),
        grid=(M // _TILE_N,),
        in_specs=[pl.BlockSpec((_TILE_N, K * Cin), lambda i: (i, 0)),
                  pl.BlockSpec((K * Cin, Cout), lambda i: (0, 0)),
                  pl.BlockSpec((1, Cout), lambda i: (0, 0))],
        out_specs=pl.BlockSpec((_TILE_N, Cout), lambda i: (i, 0)),
        compiler_params=_cparams(("parallel",)),
    )(gathered, w2d, b.reshape(1, -1))


def pallas_global_maxpool(x, starts, counts):
    # Single pass over N accumulating per-batch maxima into a (B, C) VMEM scratch
    # (the feature matrix is streamed exactly once regardless of batch size).
    N, C = x.shape
    B = int(starts.shape[0])
    nT = N // _TILE_N

    def kernel(st_ref, ct_ref, x_ref, o_ref, acc_ref):
        i = pl.program_id(0)

        @pl.when(i == 0)
        def _():
            acc_ref[...] = jnp.full_like(acc_ref, _NEG)

        row = i * _TILE_N + jax.lax.broadcasted_iota(jnp.int32, (_TILE_N, 1), 0)
        xb = x_ref[...]
        for bb in range(B):                              # static unroll over batch
            s = st_ref[bb]
            valid = (row >= s) & (row < s + ct_ref[bb])
            tile_max = jnp.max(jnp.where(valid, xb, _NEG), axis=0, keepdims=True)
            acc_ref[bb:bb + 1, :] = jnp.maximum(acc_ref[bb:bb + 1, :], tile_max)

        @pl.when(i == nT - 1)
        def _():
            for bb in range(B):
                o_ref[bb:bb + 1, :] = jnp.where(ct_ref[bb] > 0,          # empty -> 0
                                                acc_ref[bb:bb + 1, :], 0.0)

    return pl.pallas_call(
        kernel,
        out_shape=jax.ShapeDtypeStruct((B, C), jnp.float32),
        grid_spec=pltpu.PrefetchScalarGridSpec(
            num_scalar_prefetch=2,
            grid=(nT,),
            in_specs=[pl.BlockSpec((_TILE_N, C), lambda i, s, c: (i, 0))],
            out_specs=pl.BlockSpec((B, C), lambda i, s, c: (0, 0)),
            scratch_shapes=[pltpu.VMEM((B, C), jnp.float32)]),
        compiler_params=_cparams(("arbitrary",)),
    )(starts, counts, x)


# ----------------------------------------------------------------------------
# Host-side coordinate manager (kernel maps), mirroring MinkowskiEngine
# ----------------------------------------------------------------------------
def _offsets(kernel_size, tensor_stride):
    if kernel_size % 2 == 1:
        rng = range(-(kernel_size // 2), kernel_size // 2 + 1)
    else:
        rng = range(0, kernel_size)
    return [tuple(tensor_stride * d for d in off)
            for off in itertools.product(rng, repeat=3)]


def _kernel_map(out_coords, in_coords, offsets, n_out_pad, sentinel):
    lookup = {tuple(int(v) for v in c): i for i, c in enumerate(in_coords)}
    idx = np.full((n_out_pad, len(offsets)), sentinel, dtype=np.int32)
    for m, c in enumerate(out_coords):
        b, cx, cy, cz = (int(v) for v in c)
        for k, (dx, dy, dz) in enumerate(offsets):
            j = lookup.get((b, cx + dx, cy + dy, cz + dz))
            if j is not None:
                idx[m, k] = j
    return idx


def _compact_kernel_map(idx_full, sentinel, chunk):
    # Drop offsets whose column is entirely sentinel (no neighbour anywhere at this
    # level); pad the kept set to a multiple of `chunk`. Returns the map transposed
    # to (K_pad, N_pad) so the gather lands directly in (K, N, C) layout, plus the
    # list of kept offset indices (to select the matching depthwise weight rows).
    K = idx_full.shape[1]
    keep = [k for k in range(K) if np.any(idx_full[:, k] != sentinel)]
    if not keep:
        keep = [K // 2]                                   # centre offset fallback
    k_pad = _round_up(len(keep), chunk)
    keep_arr = np.zeros((k_pad,), np.int32)
    keep_arr[:len(keep)] = np.asarray(keep, np.int32)
    idx_c = np.full((k_pad, idx_full.shape[0]), sentinel, np.int32)
    idx_c[:len(keep)] = idx_full[:, keep].T
    return np.ascontiguousarray(idx_c), keep_arr


def _batch_ranges(coords, num_batches):
    bcol = coords[:, 0]
    starts = np.searchsorted(bcol, np.arange(num_batches), side='left')
    ends = np.searchsorted(bcol, np.arange(num_batches), side='right')
    return starts.astype(np.int32), (ends - starts).astype(np.int32)


def build_coordinate_data(coords, num_levels, num_batches):
    # TODO(synk): the hash-based coordinate manager has no clean Pallas equivalent;
    # kernel maps are built host-side in numpy (glue only, no feature math).
    levels = []
    cur = np.asarray(coords, dtype=np.int64)
    for lvl in range(num_levels):
        ts = 2 ** lvl
        n_valid = cur.shape[0]
        n_pad = _round_up(max(n_valid, 1), _TILE_N)
        entry = {'coords': cur, 'n_valid': n_valid, 'n_pad': n_pad}
        dw_full = _kernel_map(cur, cur, _offsets(DW_KERNEL_SIZE, ts), n_pad, n_pad)
        entry['dw_idx'], entry['dw_keep'] = _compact_kernel_map(dw_full, n_pad, _KC_DW)
        if lvl < num_levels - 1:
            nxt = cur.copy()
            nxt[:, 1:] = (cur[:, 1:] // (2 * ts)) * (2 * ts)
            nxt = np.unique(nxt, axis=0)
            m_pad = _round_up(max(nxt.shape[0], 1), _TILE_N)
            entry['ds_idx'] = _kernel_map(nxt, cur, _offsets(DS_KERNEL_SIZE, ts),
                                          m_pad, n_pad)
            levels.append(entry)
            cur = nxt
        else:
            levels.append(entry)
    stem_starts, stem_counts = _batch_ranges(levels[0]['coords'], num_batches)
    pool_starts, pool_counts = _batch_ranges(levels[-1]['coords'], num_batches)
    return {'levels': levels,
            'stem_starts': stem_starts, 'stem_counts': stem_counts,
            'pool_starts': pool_starts, 'pool_counts': pool_counts}


# ----------------------------------------------------------------------------
# Parameters (deterministic synthetic init, mirroring _init_weights)
# ----------------------------------------------------------------------------
class _KeyGen:
    def __init__(self, key):
        self.key = key
        self.i = 0

    def __call__(self):
        self.i += 1
        return jax.random.fold_in(self.key, self.i)


def _trunc_normal(key, shape, std=0.02):
    return std * jax.random.truncated_normal(key, -2.0, 2.0, shape, jnp.float32)


def init_params(key, in_channels, is_v5=False):
    kg = _KeyGen(key)
    glob_in = 1 + 1 + 1 + 1 + 9 + (10 if is_v5 else 15)   # 23 (v5) / 28
    p = {
        'stem_w': _trunc_normal(kg(), (in_channels, DIMS[0])),   # 1x1 conv, no bias
        'stem_ln_g': jnp.ones((DIMS[0],), jnp.float32),
        'stem_ln_b': jnp.zeros((DIMS[0],), jnp.float32),
        'glob_w': _trunc_normal(kg(), (glob_in, DIMS[0])),
        'glob_b': jnp.zeros((DIMS[0],), jnp.float32),
        'blocks': [],
        'down': [],
    }
    for i, d in enumerate(DIMS):
        stage = []
        for _ in range(DEPTHS[i]):
            stage.append({
                'dw_w': _trunc_normal(kg(), (_K_DW, d)),
                'dw_b': jnp.zeros((d,), jnp.float32),
                'ln_g': jnp.ones((d,), jnp.float32),
                'ln_b': jnp.zeros((d,), jnp.float32),
                'pw1_w': _trunc_normal(kg(), (d, 4 * d)),
                'pw1_b': jnp.zeros((4 * d,), jnp.float32),
                'grn_g': jnp.zeros((4 * d,), jnp.float32),
                'grn_b': jnp.zeros((4 * d,), jnp.float32),
                'pw2_w': _trunc_normal(kg(), (4 * d, d)),
                'pw2_b': jnp.zeros((d,), jnp.float32),
            })
        p['blocks'].append(stage)
        if i < len(DIMS) - 1:
            p['down'].append({
                'ln_g': jnp.ones((DIMS[i],), jnp.float32),
                'ln_b': jnp.zeros((DIMS[i],), jnp.float32),
                'w': _trunc_normal(kg(), (_K_DS, DIMS[i], DIMS[i + 1])),
                'b': jnp.zeros((DIMS[i + 1],), jnp.float32),
            })
    p['flav_w1'] = _trunc_normal(kg(), (DIMS[-1], DIMS[-1]))
    p['flav_b1'] = jnp.zeros((DIMS[-1],), jnp.float32)
    p['flav_w2'] = _trunc_normal(kg(), (DIMS[-1], 4))
    p['flav_b2'] = jnp.zeros((4,), jnp.float32)
    return p


# ----------------------------------------------------------------------------
# Forward pass
# ----------------------------------------------------------------------------
def convnext_block(x, blk, dw_idx, dw_keep, n_valid):
    N, C = x.shape
    # neighbour gather for the depthwise conv, restricted to the compacted offset
    # set (sentinel row N is all-zero).
    # TODO(synk): the row gather itself stays plain-XLA glue; the compaction keeps
    # the materialized tensor small (K_used << 125 offsets for sparse clouds).
    xe = jnp.concatenate([x.astype(jnp.bfloat16),
                          jnp.zeros((1, C), jnp.bfloat16)], axis=0)
    gathered = jnp.take(xe, dw_idx, axis=0)               # (K_pad, N, C) bf16
    w_used = jnp.take(blk['dw_w'], dw_keep, axis=0)       # (K_pad, C) f32 (tiny)
    y = pallas_dwconv_ln(gathered, w_used, blk['dw_b'],
                         blk['ln_g'], blk['ln_b'])        # (N, C) bf16
    h, sq = pallas_pw1_gelu_grnsq(y, blk['pw1_w'], blk['pw1_b'], n_valid)
    scale = pallas_grn_scale(sq, blk['grn_g'])            # (1, 4C) bf16 = 1+g*nx
    return pallas_grn_pw2_add(h, scale, blk['grn_b'],
                              blk['pw2_w'], blk['pw2_b'], x)   # (N, C) f32


def forward(params, feats, x_glob, coord_data):
    levels = coord_data['levels']
    n_pad0 = levels[0]['n_pad']
    feats = jnp.pad(feats, ((0, n_pad0 - feats.shape[0]), (0, 0)))

    # stem (1x1 sparse conv, bias=False) + broadcasted global MLP + stem LayerNorm
    xg = pallas_linear(x_glob, params['glob_w'], params['glob_b'])          # (B, 96)
    x = pallas_stem_ln(feats, params['stem_w'], xg,
                       jnp.asarray(coord_data['stem_starts']),
                       jnp.asarray(coord_data['stem_counts']),
                       params['stem_ln_g'], params['stem_ln_b'])            # f32

    for i in range(len(DIMS)):
        lvl = levels[i]
        dw_idx = jnp.asarray(lvl['dw_idx'])
        dw_keep = jnp.asarray(lvl['dw_keep'])
        for blk in params['blocks'][i]:
            x = convnext_block(x, blk, dw_idx, dw_keep, lvl['n_valid'])
        if i < len(DIMS) - 1:
            d = params['down'][i]
            xl = pallas_layernorm(x, d['ln_g'], d['ln_b'], out_dtype=jnp.bfloat16)
            x = pallas_downsample(xl, d['w'], d['b'], jnp.asarray(lvl['ds_idx']))

    pooled = pallas_global_maxpool(x,
                                   jnp.asarray(coord_data['pool_starts']),
                                   jnp.asarray(coord_data['pool_counts']))  # (B, 768)
    h = pallas_linear_gelu(pooled, params['flav_w1'], params['flav_b1'])
    out_flavour = pallas_linear(h, params['flav_w2'], params['flav_b2'])    # (B, 4)
    return {'out_flavour': out_flavour}


# ----------------------------------------------------------------------------
# Main
# ----------------------------------------------------------------------------
if __name__ == "__main__":
    B = 2
    in_channels = 4
    spatial = 16
    pts_per_batch = 24
    is_v5 = False
    glob_in = 1 + 1 + 1 + 1 + 9 + (10 if is_v5 else 15)   # 28

    key = jax.random.PRNGKey(0)
    k_coord, k_feat, k_glob, k_param = jax.random.split(key, 4)

    # build unique voxel coordinates per batch (rows sorted by batch)
    coords_list = []
    for b in range(B):
        kb = jax.random.fold_in(k_coord, b)
        flat = np.asarray(jax.random.choice(kb, spatial ** 3, (pts_per_batch,),
                                            replace=False))
        xs = flat // (spatial * spatial)
        ys = (flat // spatial) % spatial
        zs = flat % spatial
        coords_list.append(np.stack([np.full_like(xs, b), xs, ys, zs], axis=1))
    coords = np.concatenate(coords_list, axis=0).astype(np.int32)   # (N, 4)

    feats = jax.random.normal(k_feat, (coords.shape[0], in_channels), jnp.float32)
    x_glob = jax.random.normal(k_glob, (B, glob_in), jnp.float32)

    coord_data = build_coordinate_data(coords, num_levels=len(DIMS), num_batches=B)
    params = init_params(k_param, in_channels, is_v5=is_v5)

    out = forward(params, feats, x_glob, coord_data)
    out_flavour = jax.block_until_ready(out['out_flavour'])

    assert out_flavour.shape == (B, 4)
    assert bool(jnp.all(jnp.isfinite(out_flavour)))
    print("KERNEL_OK")
</pallas_src>

<mosaic_0001>
module attributes {stable_mosaic.version = 11 : i64} {
  func.func @_linear_kernel(%arg0: memref<2x28xf32, #tpu.memory_space<vmem>>, %arg1: memref<28x96xf32, #tpu.memory_space<vmem>>, %arg2: memref<1x96xf32, #tpu.memory_space<vmem>>, %arg3: memref<2x96xf32, #tpu.memory_space<vmem>>) attributes {dimension_semantics = [], scalar_prefetch = 0 : i64, scratch_operands = 0 : i64, tpu.core_type = #tpu.core_type<tc>} {
    %c0 = arith.constant 0 : index
    %c0_0 = arith.constant 0 : index
    %0 = vector.load %arg0[%c0, %c0_0] : memref<2x28xf32, #tpu.memory_space<vmem>>, vector<2x28xf32>
    %c0_1 = arith.constant 0 : index
    %c0_2 = arith.constant 0 : index
    %1 = vector.load %arg1[%c0_1, %c0_2] : memref<28x96xf32, #tpu.memory_space<vmem>>, vector<28x96xf32>
    %cst = arith.constant dense<0.000000e+00> : vector<2x96xf32>
    %2 = tpu.matmul %0, %1, %cst {dimension_numbers = #tpu.dot_dimension_numbers<[1], [0], [0], [1], [0, 0, 1, 1], [], []>} : vector<2x28xf32>, vector<28x96xf32>, vector<2x96xf32> -> vector<2x96xf32>
    %c0_3 = arith.constant 0 : index
    %c0_4 = arith.constant 0 : index
    %3 = vector.load %arg2[%c0_3, %c0_4] : memref<1x96xf32, #tpu.memory_space<vmem>>, vector<1x96xf32>
    %4 = vector.broadcast %3 : vector<1x96xf32> to vector<2x96xf32>
    %5 = arith.addf %2, %4 : vector<2x96xf32>
    %c0_5 = arith.constant 0 : index
    %c0_6 = arith.constant 0 : index
    %6 = vector.load %arg3[%c0_5, %c0_6] : memref<2x96xf32, #tpu.memory_space<vmem>>, vector<2x96xf32>
    tpu.vector_store %arg3[%c0_5, %c0_6], %5 {strides = array<i32>} : memref<2x96xf32, #tpu.memory_space<vmem>>, vector<2x96xf32>,
    return
  }
}

</mosaic_0001>

<llo_original>
// kernel: tpu_custom_call.1
$region0: #{tpu_custom_call.1}
  #allocation0 [shape = 'u32[]', space=smem, size = 0x4, offset = 0x4, fixed_abs, tag = 'smem constant byte address 0x4 - core index']
  #allocation1 [shape = 'u32[72,128]{1,0:T(1,128)}', space=vmem, size = 0x9000, scoped, tag = 'internal scratch']
  %s0 = inlined_call_operand.hbm [shape: f32[2,28], index: 0, kind: input, shape index: {}]
  %s1 = inlined_call_operand.hbm [shape: f32[28,96], index: 1, kind: input, shape index: {}]
  %s2 = inlined_call_operand.vmem [shape: f32[1,96], index: 2, kind: input, shape index: {}]
  %s3 = inlined_call_operand.hbm [shape: f32[2,96], index: 3, kind: output, shape index: {}]
  %s4 = sld [smem:[#allocation0]]
  $region30: #{tpu_custom_call.1} parent=0
    _
  %s6 = ssub.s32 1, %s4
  %s7 = scalar_select 0, %s6, %s4
  $region1: #{tpu_custom_call.1} parent=0
    #allocation2 [shape = 'u8[1024]{0}', space=vmem, size = 0x400, scoped, tag = 'input window, operand 0, single buffered']
    #allocation3 [shape = 's32[1]{0}', space=sflag, size = 0x4, scoped, tag = 'scoped memory for tpu_custom_call.1']
    #allocation4 [shape = 's32[1]{0}', space=sflag, size = 0x4, scoped, tag = 'scoped memory for tpu_custom_call.1']
    #allocation5 [shape = 'u8[16384]{0}', space=vmem, size = 0x4000, scoped, tag = 'input window, operand 1, single buffered']
    #allocation6 [shape = 's32[1]{0}', space=sflag, size = 0x4, scoped, tag = 'scoped memory for tpu_custom_call.1']
    #allocation7 [shape = 'u8[1024]{0}', space=vmem, size = 0x400, scoped, tag = 'output window, operand 0, single buffered']
    %8 = vsyncpa [#allocation3], 0
    %9 = vsyncpa [#allocation6], 0
    %10 = vsyncpa [#allocation4], 0
    // Predicated region
    $region2: #{tpu_custom_call.1} parent=1 // pred_check
      _
    $region3: #{tpu_custom_call.1} parent=1 // pred_check_branch
      %12 = sbr.rel (0) target = $region5
    $region4: #{tpu_custom_call.1} parent=1 // pred_region
      %14 = vsyncadd [#allocation3], 0
      %s16 = sshll.u32 %s0, 4
      %s17 = int_to_ptr.hbm [resolvable:$true] %s16
      %s18 = sshll.u32 [#allocation2], 4
      %s19 = int_to_ptr.vmem [resolvable:$true] %s18
      %21 = dma.hbm_to_vmem [thread:$0]  %s17, 32, %s19, [#allocation3]
    $region5: #{tpu_custom_call.1} parent=1 // pred_fallthru
      _
    // Predicated region
    $region6: #{tpu_custom_call.1} parent=1 // pred_check
      _
    $region7: #{tpu_custom_call.1} parent=1 // pred_check_branch
      %23 = sbr.rel (0) target = $region9
    $region8: #{tpu_custom_call.1} parent=1 // pred_region
      %25 = vsyncadd [#allocation6], 0
      %s26 = sshll.u32 %s1, 4
      %s27 = int_to_ptr.hbm [resolvable:$true] %s26
      %s28 = sshll.u32 [#allocation5], 4
      %s29 = int_to_ptr.vmem [resolvable:$true] %s28
      %34 = dma.hbm_to_vmem [thread:$0]  %s27, 512, %s29, [#allocation6], 128, 128, 8
    $region9: #{tpu_custom_call.1} parent=1 // pred_fallthru
      _
    // Predicated region
    $region10: #{tpu_custom_call.1} parent=1 // pred_check
      _
    $region11: #{tpu_custom_call.1} parent=1 // pred_check_branch
      %36 = sbr.rel (0) target = $region13
    $region12: #{tpu_custom_call.1} parent=1 // pred_region
      _
    $region13: #{tpu_custom_call.1} parent=1 // pred_fallthru
      _
    // Predicated region
    $region14: #{tpu_custom_call.1} parent=1 // pred_check
      _
    $region15: #{tpu_custom_call.1} parent=1 // pred_check_branch
      %38 = sbr.rel (0) target = $region17
    $region16: #{tpu_custom_call.1} parent=1 // pred_region
      %40 = dma.done [#allocation3], 32
    $region17: #{tpu_custom_call.1} parent=1 // pred_fallthru
      _
    // Predicated region
    $region18: #{tpu_custom_call.1} parent=1 // pred_check
      _
    $region19: #{tpu_custom_call.1} parent=1 // pred_check_branch
      %42 = sbr.rel (0) target = $region21
    $region20: #{tpu_custom_call.1} parent=1 // pred_region
      %44 = dma.done [#allocation6], 512
    $region21: #{tpu_custom_call.1} parent=1 // pred_fallthru
      _
    %v45 = vld [vmem:[#allocation2] sm:$0x3]
    %v46 = vld [vmem:[#allocation5] sm:$0xff]
    %v47 = vld [vmem:[#allocation5 + $0x8] sm:$0xff]
    %v48 = vld [vmem:[#allocation5 + $0x10] sm:$0xff]
    %v49 = vld [vmem:[#allocation5 + $0x18] sm:$0xf]
    %v50 = vld [vmem:[%s2] sm:$0x1]
    %v52 = vperm.slane %v50, 0
    %vm54 = vcmask 228352
    %v56 = vsel %vm54, %v45, 0
    %vm58 = vcmask 1043456
    %v60 = vsel %vm58, %v49, 0
    %62 = vmatpush.msra.mxu0 0.0
    %63 = vmatpush.msra.mxu0 0.0
    %64 = vmatpush.msra.mxu0 0.0
    %65 = vmatpush.msra.mxu0 0.0
    %66 = vmatpush.msra.mxu0 0.0
    %67 = vmatpush.msra.mxu0 0.0
    %68 = vmatpush.msra.mxu0 0.0
    %69 = vmatpush.msra.mxu0 0.0
    %70 = vmatpush.msra.mxu0 0.0
    %71 = vmatpush.msra.mxu0 0.0
    %72 = vmatpush.msra.mxu0 0.0
    %73 = vmatpush.msra.mxu0 0.0
    %74 = vmatpush.msra.mxu0 %v60
    %75 = vmatpush.msra.mxu0 %v48
    %76 = vmatpush.msra.mxu0 %v47
    %77 = vmatpush.msra.mxu0 %v46
    %78 = vmatmul.f32.gmra.mxu0 %v56
    %v79 = vpop.f32.mrf.mxu0
    %v80 = vadd.f32 %v52, %v79
    %81 = vdwg.mxu0
    %vm82 = vcmask 779264
    %83 = vst.msk [vmem:[#allocation7] sm:$0x3] %vm82, %v80
    // Predicated region
    $region22: #{tpu_custom_call.1} parent=1 // pred_check
      _
    $region23: #{tpu_custom_call.1} parent=1 // pred_check_branch
      %85 = sbr.rel (0) target = $region25
    $region24: #{tpu_custom_call.1} parent=1 // pred_region
      %87 = vsyncadd [#allocation4], 0
      %s89 = sshll.u32 [#allocation7], 4
      %s90 = int_to_ptr.vmem [resolvable:$true] %s89
      %s91 = sshll.u32 %s3, 4
      %s92 = int_to_ptr.hbm [resolvable:$true] %s91
      %94 = dma.vmem_to_hbm [thread:$0]  %s90, 32, %s92, [#allocation4]
    $region25: #{tpu_custom_call.1} parent=1 // pred_fallthru
      _
    // Predicated region
    $region26: #{tpu_custom_call.1} parent=1 // pred_check
      _
    $region27: #{tpu_custom_call.1} parent=1 // pred_check_branch
      %96 = sbr.rel (0) target = $region29
    $region28: #{tpu_custom_call.1} parent=1 // pred_region
      %98 = dma.done [#allocation4], 32
    $region29: #{tpu_custom_call.1} parent=1 // pred_fallthru
      _
    %99 = vsyncpa [#allocation3], 1
    %100 = vsyncpa [#allocation6], 1
    %101 = vsyncpa [#allocation4], 1

</llo_original>
